<compile_context>
chip_gen: v7x
topology: tpu7x:2x2x1
jax: 0.10.0
libtpu: 0.0.40
codegen_flags: <defaults>
</compile_context>

<pallas_src>
import jax
import jax.numpy as jnp
from jax.experimental import pallas as pl
from jax.experimental.pallas import tpu as pltpu


def _round_up(x: int, m: int) -> int:
    return ((x + m - 1) // m) * m


def _choose_block_b(batch: int) -> int:
    """Row-tile size: big tiles to amortize per-step overhead, but >= 2 grid
    steps when the batch allows it (keeps both v7x TensorCores busy)."""
    b128 = _round_up(batch, 128)
    if b128 <= 128:
        return 128
    return min(1024, _round_up(pl.cdiv(b128, 2), 128))


def soft_q_kernel(xa_ref, w1_ref, b1_ref, w2_ref, b2_ref, w3_ref, b3_ref,
                  out_ref):
    # fc1: fused [TB, obs+act] @ [obs+act, 256] on the MXU, f32 accumulation.
    h = jnp.dot(xa_ref[...], w1_ref[...], preferred_element_type=jnp.float32)
    h = jnp.maximum(h + b1_ref[...], 0.0)              # bias + ReLU (VPU, f32)

    # fc2: cast activations back to the compute dtype for the MXU.
    h = jnp.dot(h.astype(w2_ref.dtype), w2_ref[...],
                preferred_element_type=jnp.float32)
    h = jnp.maximum(h + b2_ref[...], 0.0)

    # fc3: q_row[0, j] = sum_k w3[0, k] * h[j, k]  ->  [1, TB] (lane-dense row).
    # Computed as a contraction of w3 [1,256] with h [TB,256] on its last dim
    # (q @ k^T-style dot_general), so the output is already lane-major.
    q_row = jax.lax.dot_general(
        w3_ref[...], h,
        dimension_numbers=(((1,), (1,)), ((), ())),
        preferred_element_type=jnp.float32)
    out_ref[0] = (q_row + b3_ref[0, 0]).astype(out_ref.dtype)


@jax.jit
def soft_q_forward(x, a, params):
    """x: [B, obs_dim] f32, a: [B, act_dim] f32 -> q: [B, 1] f32.

    `params` must come from `prepare_params` (fc1/fc2 weights already bf16),
    so no weight casts sit on the per-call hot path.
    """
    w1, b1, w2, b2, w3, b3 = params
    B = x.shape[0]
    k_in = x.shape[1] + a.shape[1]
    hidden = w1.shape[1]
    assert w1.shape[0] == k_in

    compute_dtype = w1.dtype  # bf16 (from prepare_params)

    # torch.cat([x, a], dim=1) folded into a single fused fc1 operand.
    # TODO(synk): rely on XLA to fuse concat/cast/pad into the operand; at these
    # sizes the extra traffic is negligible and not worth allow_input_fusion.
    xa = jnp.concatenate([x, a], axis=1).astype(compute_dtype)

    block_b = _choose_block_b(B)
    n_blocks = pl.cdiv(B, block_b)
    b_pad = n_blocks * block_b
    if b_pad != B:
        xa = jnp.pad(xa, ((0, b_pad - B), (0, 0)))

    out = pl.pallas_call(
        soft_q_kernel,
        # Lane-dense output slab: one [1, block_b] row per grid step.
        out_shape=jax.ShapeDtypeStruct((n_blocks, 1, block_b), jnp.float32),
        grid_spec=pltpu.PrefetchScalarGridSpec(
            num_scalar_prefetch=0,
            grid=(n_blocks,),
            in_specs=[
                # activations: tiled along the batch, pipelined per grid step
                pl.BlockSpec((block_b, k_in), lambda i: (i, 0)),
                # weights / biases: constant block index -> stay VMEM-resident
                pl.BlockSpec((k_in, hidden), lambda i: (0, 0)),
                pl.BlockSpec((1, hidden), lambda i: (0, 0)),
                pl.BlockSpec((hidden, hidden), lambda i: (0, 0)),
                pl.BlockSpec((1, hidden), lambda i: (0, 0)),
                pl.BlockSpec((1, hidden), lambda i: (0, 0)),
                # b3 scalar bias lives in SMEM (no VMEM tile / vreg broadcast)
                pl.BlockSpec(memory_space=pltpu.MemorySpace.SMEM),
            ],
            out_specs=pl.BlockSpec((1, 1, block_b), lambda i: (i, 0, 0)),
        ),
        compiler_params=pltpu.CompilerParams(
            dimension_semantics=("parallel",)),
    )(xa, w1, b1, w2, b2, w3, b3)

    # (n_blocks, 1, block_b) -> flat (b_pad,) -> slice padded rows -> [B, 1]
    return out.reshape(-1)[:B][:, None]


def init_params(key, obs_dim, act_dim, hidden=256):
    """Deterministic f32 init mimicking nn.Linear default (+/- 1/sqrt(fan_in)).
    fc1/fc2 weights stored as [in, out] (transposed vs. PyTorch's [out, in]);
    fc3 weight kept as the PyTorch [1, hidden] row."""
    in1 = obs_dim + act_dim
    k = jax.random.split(key, 6)

    def u(k_, shape, fan_in):
        bound = 1.0 / jnp.sqrt(jnp.float32(fan_in))
        return jax.random.uniform(k_, shape, jnp.float32, -bound, bound)

    w1 = u(k[0], (in1, hidden), in1)
    b1 = u(k[1], (1, hidden), in1)
    w2 = u(k[2], (hidden, hidden), hidden)
    b2 = u(k[3], (hidden, hidden)[0:1] + (hidden,), hidden)[0:1]  # (1, hidden)
    b2 = u(k[3], (1, hidden), hidden)
    w3 = u(k[4], (1, hidden), hidden)
    b3 = u(k[5], (1, 1), hidden)
    return (w1, b1, w2, b2, w3, b3)


def prepare_params(params):
    """One-time cast of the MXU matmul weights to bf16 (do NOT call per step)."""
    w1, b1, w2, b2, w3, b3 = params
    return (w1.astype(jnp.bfloat16), b1,
            w2.astype(jnp.bfloat16), b2,
            w3, b3)


def reference_forward(x, a, params):
    w1, b1, w2, b2, w3, b3 = params
    xa = jnp.concatenate([x, a], axis=1)
    h = jax.nn.relu(xa @ w1 + b1)
    h = jax.nn.relu(h @ w2 + b2)
    return h @ w3.T + b3


if __name__ == "__main__":
    # Small SAC-like shapes: obs_dim=17, act_dim=6 (HalfCheetah-ish).
    OBS, ACT = 17, 6

    key = jax.random.PRNGKey(0)
    kx, ka, kp = jax.random.split(key, 3)
    params = init_params(kp, OBS, ACT, hidden=256)
    kernel_params = prepare_params(params)   # bf16 weights cached once

    ok = True
    for B in (8, 300):   # single-tile path and multi-block (>=2 "parallel" steps) path
        kx_b, ka_b = jax.random.split(jax.random.fold_in(kx, B))
        x = jax.random.normal(kx_b, (B, OBS), jnp.float32)
        a = jax.random.normal(ka_b, (B, ACT), jnp.float32)

        q = soft_q_forward(x, a, kernel_params)
        q = jax.block_until_ready(q)

        q_ref = reference_forward(x, a, params)
        assert q.shape == (B, 1), q.shape
        # bf16 matmuls with f32 accumulation -> loosened tolerance vs. f32 ref.
        ok = ok and bool(jnp.allclose(q, q_ref, atol=5e-2, rtol=5e-2))

    assert ok
    print("KERNEL_OK")
</pallas_src>

<mosaic_0001>
module attributes {stable_mosaic.version = 11 : i64} {
  func.func @soft_q_kernel(%arg0: i32, %arg1: memref<128x23xbf16, #tpu.memory_space<vmem>>, %arg2: memref<23x256xbf16, #tpu.memory_space<vmem>>, %arg3: memref<1x256xf32, #tpu.memory_space<vmem>>, %arg4: memref<256x256xbf16, #tpu.memory_space<vmem>>, %arg5: memref<1x256xf32, #tpu.memory_space<vmem>>, %arg6: memref<1x256xf32, #tpu.memory_space<vmem>>, %arg7: memref<1x1xf32, #tpu.memory_space<smem>>, %arg8: memref<1x1x128xf32, #tpu.memory_space<vmem>>) attributes {dimension_semantics = [#tpu.dimension_semantics<parallel>], iteration_bounds = array<i64: 1>, scalar_prefetch = 0 : i64, scratch_operands = 0 : i64, tpu.core_type = #tpu.core_type<tc>, window_params = [{transform_indices = @transform_0, window_bounds = array<i64: 128, 23>}, {pipeline_mode = #tpu.pipeline_mode<synchronous>, transform_indices = @transform_1, window_bounds = array<i64: 23, 256>}, {pipeline_mode = #tpu.pipeline_mode<synchronous>, transform_indices = @transform_2, window_bounds = array<i64: 1, 256>}, {pipeline_mode = #tpu.pipeline_mode<synchronous>, transform_indices = @transform_3, window_bounds = array<i64: 256, 256>}, {pipeline_mode = #tpu.pipeline_mode<synchronous>, transform_indices = @transform_4, window_bounds = array<i64: 1, 256>}, {pipeline_mode = #tpu.pipeline_mode<synchronous>, transform_indices = @transform_5, window_bounds = array<i64: 1, 256>}, {transform_indices = @transform_6, window_bounds = array<i64: 1, 1>}, {transform_indices = @transform_7, window_bounds = array<i64: 1, 1, 128>}]} {
    %c0 = arith.constant 0 : index
    %c0_0 = arith.constant 0 : index
    %0 = vector.load %arg1[%c0, %c0_0] : memref<128x23xbf16, #tpu.memory_space<vmem>>, vector<128x23xbf16>
    %c0_1 = arith.constant 0 : index
    %c0_2 = arith.constant 0 : index
    %1 = vector.load %arg2[%c0_1, %c0_2] : memref<23x256xbf16, #tpu.memory_space<vmem>>, vector<23x256xbf16>
    %cst = arith.constant dense<0.000000e+00> : vector<128x256xf32>
    %2 = tpu.matmul %0, %1, %cst {dimension_numbers = #tpu.dot_dimension_numbers<[1], [0], [0], [1], [0, 0, 1, 1], [], []>} : vector<128x23xbf16>, vector<23x256xbf16>, vector<128x256xf32> -> vector<128x256xf32>
    %c0_3 = arith.constant 0 : index
    %c0_4 = arith.constant 0 : index
    %3 = vector.load %arg3[%c0_3, %c0_4] : memref<1x256xf32, #tpu.memory_space<vmem>>, vector<1x256xf32>
    %4 = vector.broadcast %3 : vector<1x256xf32> to vector<128x256xf32>
    %5 = arith.addf %2, %4 : vector<128x256xf32>
    %cst_5 = arith.constant 0.000000e+00 : f32
    %6 = vector.broadcast %cst_5 : f32 to vector<128x256xf32>
    %7 = arith.maximumf %5, %6 : vector<128x256xf32>
    %8 = arith.truncf %7 : vector<128x256xf32> to vector<128x256xbf16>
    %c0_6 = arith.constant 0 : index
    %c0_7 = arith.constant 0 : index
    %9 = vector.load %arg4[%c0_6, %c0_7] : memref<256x256xbf16, #tpu.memory_space<vmem>>, vector<256x256xbf16>
    %cst_8 = arith.constant dense<0.000000e+00> : vector<128x256xf32>
    %10 = tpu.matmul %8, %9, %cst_8 {dimension_numbers = #tpu.dot_dimension_numbers<[1], [0], [0], [1], [0, 0, 1, 1], [], []>} : vector<128x256xbf16>, vector<256x256xbf16>, vector<128x256xf32> -> vector<128x256xf32>
    %c0_9 = arith.constant 0 : index
    %c0_10 = arith.constant 0 : index
    %11 = vector.load %arg5[%c0_9, %c0_10] : memref<1x256xf32, #tpu.memory_space<vmem>>, vector<1x256xf32>
    %12 = vector.broadcast %11 : vector<1x256xf32> to vector<128x256xf32>
    %13 = arith.addf %10, %12 : vector<128x256xf32>
    %cst_11 = arith.constant 0.000000e+00 : f32
    %14 = vector.broadcast %cst_11 : f32 to vector<128x256xf32>
    %15 = arith.maximumf %13, %14 : vector<128x256xf32>
    %c0_12 = arith.constant 0 : index
    %c0_13 = arith.constant 0 : index
    %16 = vector.load %arg6[%c0_12, %c0_13] : memref<1x256xf32, #tpu.memory_space<vmem>>, vector<1x256xf32>
    %cst_14 = arith.constant dense<0.000000e+00> : vector<1x128xf32>
    %17 = tpu.matmul %16, %15, %cst_14 {dimension_numbers = #tpu.dot_dimension_numbers<[1], [1], [0], [0], [0, 0, 1, 0], [], []>} : vector<1x256xf32>, vector<128x256xf32>, vector<1x128xf32> -> vector<1x128xf32>
    %c0_15 = arith.constant 0 : index
    %c0_16 = arith.constant 0 : index
    %18 = memref.load %arg7[%c0_15, %c0_16] : memref<1x1xf32, #tpu.memory_space<smem>>
    %19 = vector.broadcast %18 : f32 to vector<1x128xf32>
    %20 = arith.addf %17, %19 : vector<1x128xf32>
    %c0_17 = arith.constant 0 : index
    %c0_18 = arith.constant 0 : index
    %c0_19 = arith.constant 0 : index
    %21 = vector.load %arg8[%c0_17, %c0_18, %c0_19] : memref<1x1x128xf32, #tpu.memory_space<vmem>>, vector<1x1x128xf32>
    %22 = vector.shape_cast %21 : vector<1x1x128xf32> to vector<1x128xf32>
    %23 = vector.shape_cast %20 : vector<1x128xf32> to vector<1x1x128xf32>
    tpu.vector_store %arg8[%c0_17, %c0_18, %c0_19], %23 {strides = array<i32>} : memref<1x1x128xf32, #tpu.memory_space<vmem>>, vector<1x1x128xf32>,
    return
  }
  func.func @transform_0(%arg0: i32) -> (i32, i32) {
    %c0_i32 = arith.constant 0 : i32
    %c0_i32_0 = arith.constant 0 : i32
    return %arg0, %c0_i32 : i32, i32
  }
  func.func @transform_1(%arg0: i32) -> (i32, i32) {
    %c0_i32 = arith.constant 0 : i32
    %c0_i32_0 = arith.constant 0 : i32
    %c0_i32_1 = arith.constant 0 : i32
    return %c0_i32, %c0_i32_0 : i32, i32
  }
  func.func @transform_2(%arg0: i32) -> (i32, i32) {
    %c0_i32 = arith.constant 0 : i32
    %c0_i32_0 = arith.constant 0 : i32
    %c0_i32_1 = arith.constant 0 : i32
    return %c0_i32, %c0_i32_0 : i32, i32
  }
  func.func @transform_3(%arg0: i32) -> (i32, i32) {
    %c0_i32 = arith.constant 0 : i32
    %c0_i32_0 = arith.constant 0 : i32
    %c0_i32_1 = arith.constant 0 : i32
    return %c0_i32, %c0_i32_0 : i32, i32
  }
  func.func @transform_4(%arg0: i32) -> (i32, i32) {
    %c0_i32 = arith.constant 0 : i32
    %c0_i32_0 = arith.constant 0 : i32
    %c0_i32_1 = arith.constant 0 : i32
    return %c0_i32, %c0_i32_0 : i32, i32
  }
  func.func @transform_5(%arg0: i32) -> (i32, i32) {
    %c0_i32 = arith.constant 0 : i32
    %c0_i32_0 = arith.constant 0 : i32
    %c0_i32_1 = arith.constant 0 : i32
    return %c0_i32, %c0_i32_0 : i32, i32
  }
  func.func @transform_6(%arg0: i32) -> (i32, i32) {
    %c0_i32 = arith.constant 0 : i32
    %c0_i32_0 = arith.constant 0 : i32
    %c0_i32_1 = arith.constant 0 : i32
    return %c0_i32, %c0_i32_0 : i32, i32
  }
  func.func @transform_7(%arg0: i32) -> (i32, i32, i32) {
    %c0_i32 = arith.constant 0 : i32
    %c0_i32_0 = arith.constant 0 : i32
    %c0_i32_1 = arith.constant 0 : i32
    return %arg0, %c0_i32, %c0_i32_0 : i32, i32, i32
  }
}

</mosaic_0001>

<llo_original>
// kernel: soft_q_forward.1
$region0: #{soft_q_forward.1}
  #allocation0 [shape = 'u32[]', space=smem, size = 0x4, offset = 0x4, fixed_abs, tag = 'smem constant byte address 0x4 - core index']
  #allocation1 [shape = 'u32[144,128]{1,0:T(1,128)}', space=vmem, size = 0x12000, scoped, tag = 'internal scratch']
  #allocation2 [shape = 'f32[1,1]{1,0:T(1,128)S(6)}', space=smem, size = 0x200, scoped, tag = 'scoped memory for soft_q_forward.1']
  %s0 = inlined_call_operand.vmem [shape: bf16[128,23], index: 0, kind: input, shape index: {}]
  %s1 = inlined_call_operand.vmem [shape: bf16[23,256], index: 1, kind: input, shape index: {}]
  %s2 = inlined_call_operand.vmem [shape: f32[1,256], index: 2, kind: input, shape index: {}]
  %s3 = inlined_call_operand.hbm [shape: bf16[256,256], index: 3, kind: input, shape index: {}]
  %s4 = inlined_call_operand.vmem [shape: f32[1,256], index: 4, kind: input, shape index: {}]
  %s5 = inlined_call_operand.vmem [shape: f32[1,256], index: 5, kind: input, shape index: {}]
  %s6 = inlined_call_operand.<no memory space> [shape: f32[1,1], index: 6, kind: input, shape index: {}]
  %s7 = inlined_call_operand.vmem [shape: f32[1,1,128], index: 7, kind: output, shape index: {}]
  %s8 = sld [smem:[#allocation0]]
  $region42: #{soft_q_forward.1} parent=0
    _
  %s10 = ssub.s32 1, %s8
  %s11 = scalar_select 0, %s10, %s8
  %12 = sst [smem:[#allocation2]] %s6
  $region1: #{soft_q_forward.1} parent=0
    #allocation3 [shape = 'u8[131072]{0}', space=vmem, size = 0x20000, scoped, tag = 'input window, operand 3, single buffered']
    #allocation4 [shape = 's32[1]{0}', space=sflag, size = 0x4, scoped, tag = 'scoped memory for soft_q_forward.1']
    %13 = vsyncpa [#allocation4], 0
    // Predicated region
    $region2: #{soft_q_forward.1} parent=1 // pred_check
      _
    $region3: #{soft_q_forward.1} parent=1 // pred_check_branch
      %15 = sbr.rel (0) target = $region5
    $region4: #{soft_q_forward.1} parent=1 // pred_region
      _
    $region5: #{soft_q_forward.1} parent=1 // pred_fallthru
      _
    // Predicated region
    $region6: #{soft_q_forward.1} parent=1 // pred_check
      _
    $region7: #{soft_q_forward.1} parent=1 // pred_check_branch
      %17 = sbr.rel (0) target = $region9
    $region8: #{soft_q_forward.1} parent=1 // pred_region
      _
    $region9: #{soft_q_forward.1} parent=1 // pred_fallthru
      _
    // Predicated region
    $region10: #{soft_q_forward.1} parent=1 // pred_check
      _
    $region11: #{soft_q_forward.1} parent=1 // pred_check_branch
      %19 = sbr.rel (0) target = $region13
    $region12: #{soft_q_forward.1} parent=1 // pred_region
      _
    $region13: #{soft_q_forward.1} parent=1 // pred_fallthru
      _
    // Predicated region
    $region14: #{soft_q_forward.1} parent=1 // pred_check
      _
    $region15: #{soft_q_forward.1} parent=1 // pred_check_branch
      %21 = sbr.rel (0) target = $region17
    $region16: #{soft_q_forward.1} parent=1 // pred_region
      %s23 = ssub.s32 4096, 4096
      %24 = vsyncadd [#allocation4], %s23
      %s25 = sshll.u32 [#allocation3], 4
      %s26 = int_to_ptr.vmem [resolvable:$true] %s25
      %31 = dma.hbm_to_vmem [thread:$0]  %s3, 4096, %s26, [#allocation4], 128, 128, 8
    $region17: #{soft_q_forward.1} parent=1 // pred_fallthru
      _
    // Predicated region
    $region18: #{soft_q_forward.1} parent=1 // pred_check
      _
    $region19: #{soft_q_forward.1} parent=1 // pred_check_branch
      %33 = sbr.rel (0) target = $region21
    $region20: #{soft_q_forward.1} parent=1 // pred_region
      _
    $region21: #{soft_q_forward.1} parent=1 // pred_fallthru
      _
    // Predicated region
    $region22: #{soft_q_forward.1} parent=1 // pred_check
      _
    $region23: #{soft_q_forward.1} parent=1 // pred_check_branch
      %35 = sbr.rel (0) target = $region25
    $region24: #{soft_q_forward.1} parent=1 // pred_region
      _
    $region25: #{soft_q_forward.1} parent=1 // pred_fallthru
      _
    // Predicated region
    $region26: #{soft_q_forward.1} parent=1 // pred_check
      _
    $region27: #{soft_q_forward.1} parent=1 // pred_check_branch
      %37 = sbr.rel (0) target = $region29
    $region28: #{soft_q_forward.1} parent=1 // pred_region
      _
    $region29: #{soft_q_forward.1} parent=1 // pred_fallthru
      _
    // Predicated region
    $region30: #{soft_q_forward.1} parent=1 // pred_check
      _
    $region31: #{soft_q_forward.1} parent=1 // pred_check_branch
      %39 = sbr.rel (0) target = $region33
    $region32: #{soft_q_forward.1} parent=1 // pred_region
      %40 = dma.done [#allocation4], 4096
    $region33: #{soft_q_forward.1} parent=1 // pred_fallthru
      _
    %v42 = vld [vmem:[%s0] sm:$0xf]
    %v43 = vld [vmem:[%s0 + $0x4] sm:$0xf]
    %v44 = vld [vmem:[%s0 + $0x8] sm:$0xf]
    %v45 = vld [vmem:[%s0 + $0xc] sm:$0xf]
    %v46 = vld [vmem:[%s0 + $0x10] sm:$0xf]
    %v47 = vld [vmem:[%s0 + $0x14] sm:$0xf]
    %v48 = vld [vmem:[%s0 + $0x18] sm:$0xf]
    %v49 = vld [vmem:[%s0 + $0x1c] sm:$0xf]
    %v50 = vld [vmem:[%s0 + $0x20] sm:$0xf]
    %v51 = vld [vmem:[%s0 + $0x24] sm:$0xf]
    %v52 = vld [vmem:[%s0 + $0x28] sm:$0xf]
    %v53 = vld [vmem:[%s0 + $0x2c] sm:$0xf]
    %v54 = vld [vmem:[%s0 + $0x30] sm:$0xf]
    %v55 = vld [vmem:[%s0 + $0x34] sm:$0xf]
    %v56 = vld [vmem:[%s0 + $0x38] sm:$0xf]
    %v57 = vld [vmem:[%s0 + $0x3c] sm:$0xf]
    %v58 = vld [vmem:[%s1] sm:$0xff]
    %v59 = vld [vmem:[%s1 + $0x8] sm:$0xff]
    %v60 = vld [vmem:[%s1 + $0x10] sm:$0xff]
    %v61 = vld [vmem:[%s2] sm:$0x3]
    %v63 = vlaneseq
    %v64 = vshrl.u32 %v63, 7
    %v65 = vsub.s32 0, %v64
    %v66 = vrot.slane %v61, %v65
    %v67 = vlaneseq
    %v68 = vshrl.u32 %v67, 7
    %v69 = vsub.s32 1, %v68
    %v70 = vrot.slane %v61, %v69
    %v89 = vunpack.c.l.b16 %v42
    %v90 = vunpack.c.l.b16 %v43
    %v91 = vunpack.c.l.b16 %v44
    %v92 = vunpack.c.l.b16 %v45
    %v93 = vunpack.c.l.b16 %v46
    %v94 = vunpack.c.l.b16 %v47
    %v95 = vunpack.c.l.b16 %v48
    %v96 = vunpack.c.l.b16 %v49
    %v97 = vunpack.c.l.b16 %v50
    %v98 = vunpack.c.l.b16 %v51
    %v99 = vunpack.c.l.b16 %v52
    %v100 = vunpack.c.l.b16 %v53
    %v101 = vunpack.c.l.b16 %v54
    %v102 = vunpack.c.l.b16 %v55
    %v103 = vunpack.c.l.b16 %v56
    %v104 = vunpack.c.l.b16 %v57
    %v105 = vpack.c.b16 %v90, %v89
    %v106 = vpack.c.b16 %v92, %v91
    %v107 = vpack.c.b16 %v94, %v93
    %v108 = vpack.c.b16 %v96, %v95
    %v109 = vpack.c.b16 %v98, %v97
    %v110 = vpack.c.b16 %v100, %v99
    %v111 = vpack.c.b16 %v102, %v101
    %v112 = vpack.c.b16 %v104, %v103
    %v116 = vunpack.c.l.b16 %v58
    %v117 = vunpack.c.h.b16 %v58
    %v118 = vunpack.c.l.b16 %v59
    %v119 = vunpack.c.h.b16 %v59
    %v120 = vunpack.c.l.b16 %v60
    %v121 = vunpack.c.h.b16 %v60
    %v122 = vpack.c.b16 %v118, %v116
    %v123 = vpack.c.b16 %v119, %v117
    %v124 = vpack.c.b16 %v120, %v120
    %v125 = vpack.c.b16 %v121, %v121
    %vm128 = vcmask 187392
    %v130 = vsel %vm128, %v105, 0
    %v133 = vsel %vm128, %v106, 0
    %v136 = vsel %vm128, %v107, 0
    %v139 = vsel %vm128, %v108, 0
    %v142 = vsel %vm128, %v109, 0
    %v145 = vsel %vm128, %v110, 0
    %v148 = vsel %vm128, %v111, 0
    %v151 = vsel %vm128, %v112, 0
    %vm153 = vcmask 1042432
    %vm154 = vcmask 1043456
    %v155 = vsel %vm153, 4294967295, 65535
    %v156 = vsel %vm154, %v155, 0
    %v158 = vand.u32 %v124, %v156
    %v161 = vand.u32 %v125, %v156
    %163 = vmatprep.subr.bf16.mxu0 %v123
    %164 = vmatpush1.bf16.msra.mxu0 %v122
    %165 = vmatprep.subr.bf16.mxu0 %v161
    %166 = vmatpush1.bf16.msra.mxu0 %v158
    %167 = vmatprep.subr.bf16.mxu0 0
    %168 = vmatpush1.bf16.msra.mxu0 0
    %169 = vmatprep.subr.bf16.mxu0 0
    %170 = vmatpush1.bf16.msra.mxu0 0
    %171 = vmatprep.subr.bf16.mxu0 0
    %172 = vmatpush1.bf16.msra.mxu0 0
    %173 = vmatprep.subr.bf16.mxu0 0
    %174 = vmatpush1.bf16.msra.mxu0 0
    %175 = vmatprep.subr.bf16.mxu0 0
    %176 = vmatpush1.bf16.msra.mxu0 0
    %177 = vmatprep.subr.bf16.mxu0 0
    %178 = vmatpush1.bf16.msra.mxu0 0
    %179 = vmatprep.subr.bf16.mxu0 0
    %180 = vmatpush1.bf16.msra.mxu0 0
    %181 = vmatprep.subr.bf16.mxu0 0
    %182 = vmatpush1.bf16.msra.mxu0 0
    %183 = vmatprep.subr.bf16.mxu0 0
    %184 = vmatpush1.bf16.msra.mxu0 0
    %185 = vmatprep.subr.bf16.mxu0 0
    %186 = vmatpush1.bf16.msra.mxu0 0
    %187 = vmatprep.subr.bf16.mxu0 0
    %188 = vmatpush1.bf16.msra.mxu0 0
    %189 = vmatprep.subr.bf16.mxu0 0
    %190 = vmatpush1.bf16.msra.mxu0 0
    %191 = vmatprep.subr.bf16.mxu0 0
    %192 = vmatpush1.bf16.msra.mxu0 0
    %193 = vmatprep.subr.bf16.mxu0 0
    %194 = vmatpush1.bf16.msra.mxu0 0
    %195 = vmatprep.mubr.bf16.mxu0 0
    %196 = vmatmul.mubr.bf16.gmra.mrb[0].mxu0 %v130
    %v197 = vpop.f32.mrb[0].mxu0
    %v198 = vadd.f32 %v66, %v197
    %v199 = vpop.f32.mrb[0].mxu0
    %v200 = vadd.f32 %v70, %v199
    %v201 = vpop.f32.mrb[0].mxu0
    %v202 = vadd.f32 %v66, %v201
    %v203 = vpop.f32.mrb[0].mxu0
    %v204 = vadd.f32 %v70, %v203
    %205 = vmatprep.mubr.bf16.mxu0 0
    %206 = vmatmul.mubr.bf16.gmra.mrb[0].mxu0 %v133
    %v207 = vpop.f32.mrb[0].mxu0
    %v208 = vadd.f32 %v66, %v207
    %v209 = vpop.f32.mrb[0].mxu0
    %v210 = vadd.f32 %v70, %v209
    %v211 = vpop.f32.mrb[0].mxu0
    %v212 = vadd.f32 %v66, %v211
    %v213 = vpop.f32.mrb[0].mxu0
    %v214 = vadd.f32 %v70, %v213
    %215 = vmatprep.mubr.bf16.mxu0 0
    %216 = vmatmul.mubr.bf16.gmra.mrb[0].mxu0 %v136
    %v217 = vpop.f32.mrb[0].mxu0
    %v218 = vadd.f32 %v66, %v217
    %v219 = vpop.f32.mrb[0].mxu0
    %v220 = vadd.f32 %v70, %v219
    %v221 = vpop.f32.mrb[0].mxu0
    %v222 = vadd.f32 %v66, %v221
    %v223 = vpop.f32.mrb[0].mxu0
    %v224 = vadd.f32 %v70, %v223
    %225 = vmatprep.mubr.bf16.mxu0 0
    %226 = vmatmul.mubr.bf16.gmra.mrb[0].mxu0 %v139
    %v227 = vpop.f32.mrb[0].mxu0
    %v228 = vadd.f32 %v66, %v227
    %v229 = vpop.f32.mrb[0].mxu0
    %v230 = vadd.f32 %v70, %v229
    %v231 = vpop.f32.mrb[0].mxu0
    %v232 = vadd.f32 %v66, %v231
    %v233 = vpop.f32.mrb[0].mxu0
    %v234 = vadd.f32 %v70, %v233
    %235 = vmatprep.mubr.bf16.mxu0 0
    %236 = vmatmul.mubr.bf16.gmra.mrb[0].mxu0 %v142
    %v237 = vpop.f32.mrb[0].mxu0
    %v238 = vadd.f32 %v66, %v237
    %v239 = vpop.f32.mrb[0].mxu0
    %v240 = vadd.f32 %v70, %v239
    %v241 = vpop.f32.mrb[0].mxu0
    %v242 = vadd.f32 %v66, %v241
    %v243 = vpop.f32.mrb[0].mxu0
    %v244 = vadd.f32 %v70, %v243
    %245 = vmatprep.mubr.bf16.mxu0 0
    %246 = vmatmul.mubr.bf16.gmra.mrb[0].mxu0 %v145
    %v247 = vpop.f32.mrb[0].mxu0
    %v248 = vadd.f32 %v66, %v247
    %v249 = vpop.f32.mrb[0].mxu0
    %v250 = vadd.f32 %v70, %v249
    %v251 = vpop.f32.mrb[0].mxu0
    %v252 = vadd.f32 %v66, %v251
    %v253 = vpop.f32.mrb[0].mxu0
    %v254 = vadd.f32 %v70, %v253
    %255 = vmatprep.mubr.bf16.mxu0 0
    %256 = vmatmul.mubr.bf16.gmra.mrb[0].mxu0 %v148
    %v257 = vpop.f32.mrb[0].mxu0
    %v258 = vadd.f32 %v66, %v257
    %v259 = vpop.f32.mrb[0].mxu0
    %v260 = vadd.f32 %v70, %v259
    %v261 = vpop.f32.mrb[0].mxu0
    %v262 = vadd.f32 %v66, %v261
    %v263 = vpop.f32.mrb[0].mxu0
    %v264 = vadd.f32 %v70, %v263
    %265 = vmatprep.mubr.bf16.mxu0 0
    %266 = vmatmul.mubr.bf16.gmra.mrb[0].mxu0 %v151
    %v267 = vpop.f32.mrb[0].mxu0
    %v268 = vadd.f32 %v66, %v267
    %v269 = vpop.f32.mrb[0].mxu0
    %v270 = vadd.f32 %v70, %v269
    %v271 = vpop.f32.mrb[0].mxu0
    %v272 = vadd.f32 %v66, %v271
    %v273 = vpop.f32.mrb[0].mxu0
    %v274 = vadd.f32 %v70, %v273
    %275 = vdwg.mxu0
    %v276 = vmax.f32 %v198, 0.0
    %v277 = vmax.f32 %v200, 0.0
    %v278 = vmax.f32 %v202, 0.0
    %v279 = vmax.f32 %v204, 0.0
    %v280 = vmax.f32 %v208, 0.0
    %v281 = vmax.f32 %v210, 0.0
    %v282 = vmax.f32 %v212, 0.0
    %v283 = vmax.f32 %v214, 0.0
    %v284 = vmax.f32 %v218, 0.0
    %v285 = vmax.f32 %v220, 0.0
    %v286 = vmax.f32 %v222, 0.0
    %v287 = vmax.f32 %v224, 0.0
    %v288 = vmax.f32 %v228, 0.0
    %v289 = vmax.f32 %v230, 0.0
    %v290 = vmax.f32 %v232, 0.0
    %v291 = vmax.f32 %v234, 0.0
    %v292 = vmax.f32 %v238, 0.0
    %v293 = vmax.f32 %v240, 0.0
    %v294 = vmax.f32 %v242, 0.0
    %v295 = vmax.f32 %v244, 0.0
    %v296 = vmax.f32 %v248, 0.0
    %v297 = vmax.f32 %v250, 0.0
    %v298 = vmax.f32 %v252, 0.0
    %v299 = vmax.f32 %v254, 0.0
    %v300 = vmax.f32 %v258, 0.0
    %v301 = vmax.f32 %v260, 0.0
    %v302 = vmax.f32 %v262, 0.0
    %v303 = vmax.f32 %v264, 0.0
    %v304 = vmax.f32 %v268, 0.0
    %v305 = vmax.f32 %v270, 0.0
    %v306 = vmax.f32 %v272, 0.0
    %v307 = vmax.f32 %v274, 0.0
    %v308 = vpack.c.bf16 %v278, %v276
    %v309 = vpack.c.bf16 %v279, %v277
    %v310 = vpack.c.bf16 %v282, %v280
    %v311 = vpack.c.bf16 %v283, %v281
    %v312 = vpack.c.bf16 %v286, %v284
    %v313 = vpack.c.bf16 %v287, %v285
    %v314 = vpack.c.bf16 %v290, %v288
    %v315 = vpack.c.bf16 %v291, %v289
    %v316 = vpack.c.bf16 %v294, %v292
    %v317 = vpack.c.bf16 %v295, %v293
    %v318 = vpack.c.bf16 %v298, %v296
    %v319 = vpack.c.bf16 %v299, %v297
    %v320 = vpack.c.bf16 %v302, %v300
    %v321 = vpack.c.bf16 %v303, %v301
    %v322 = vpack.c.bf16 %v306, %v304
    %v323 = vpack.c.bf16 %v307, %v305
    %v324 = vld [vmem:[#allocation3] sm:$0xff]
    %v325 = vld [vmem:[#allocation3 + $0x8] sm:$0xff]
    %v326 = vld [vmem:[#allocation3 + $0x10] sm:$0xff]
    %v327 = vld [vmem:[#allocation3 + $0x18] sm:$0xff]
    %v328 = vld [vmem:[#allocation3 + $0x20] sm:$0xff]
    %v329 = vld [vmem:[#allocation3 + $0x28] sm:$0xff]
    %v330 = vld [vmem:[#allocation3 + $0x30] sm:$0xff]
    %v331 = vld [vmem:[#allocation3 + $0x38] sm:$0xff]
    %v332 = vld [vmem:[#allocation3 + $0x40] sm:$0xff]
    %v333 = vld [vmem:[#allocation3 + $0x48] sm:$0xff]
    %v334 = vld [vmem:[#allocation3 + $0x50] sm:$0xff]
    %v335 = vld [vmem:[#allocation3 + $0x58] sm:$0xff]
    %v336 = vld [vmem:[#allocation3 + $0x60] sm:$0xff]
    %v337 = vld [vmem:[#allocation3 + $0x68] sm:$0xff]
    %v338 = vld [vmem:[#allocation3 + $0x70] sm:$0xff]
    %v339 = vld [vmem:[#allocation3 + $0x78] sm:$0xff]
    %v340 = vld [vmem:[#allocation3 + $0x80] sm:$0xff]
    %v341 = vld [vmem:[#allocation3 + $0x88] sm:$0xff]
    %v342 = vld [vmem:[#allocation3 + $0x90] sm:$0xff]
    %v343 = vld [vmem:[#allocation3 + $0x98] sm:$0xff]
    %v344 = vld [vmem:[#allocation3 + $0xa0] sm:$0xff]
    %v345 = vld [vmem:[#allocation3 + $0xa8] sm:$0xff]
    %v346 = vld [vmem:[#allocation3 + $0xb0] sm:$0xff]
    %v347 = vld [vmem:[#allocation3 + $0xb8] sm:$0xff]
    %v348 = vld [vmem:[#allocation3 + $0xc0] sm:$0xff]
    %v349 = vld [vmem:[#allocation3 + $0xc8] sm:$0xff]
    %v350 = vld [vmem:[#allocation3 + $0xd0] sm:$0xff]
    %v351 = vld [vmem:[#allocation3 + $0xd8] sm:$0xff]
    %v352 = vld [vmem:[#allocation3 + $0xe0] sm:$0xff]
    %v353 = vld [vmem:[#allocation3 + $0xe8] sm:$0xff]
    %v354 = vld [vmem:[#allocation3 + $0xf0] sm:$0xff]
    %v355 = vld [vmem:[#allocation3 + $0xf8] sm:$0xff]
    %v356 = vld [vmem:[%s4] sm:$0x3]
    %v358 = vlaneseq
    %v359 = vshrl.u32 %v358, 7
    %v360 = vsub.s32 0, %v359
    %v361 = vrot.slane %v356, %v360
    %v362 = vlaneseq
    %v363 = vshrl.u32 %v362, 7
    %v364 = vsub.s32 1, %v363
    %v365 = vrot.slane %v356, %v364
    %v400 = vunpack.c.l.b16 %v324
    %v401 = vunpack.c.h.b16 %v324
    %v402 = vunpack.c.l.b16 %v325
    %v403 = vunpack.c.h.b16 %v325
    %v404 = vunpack.c.l.b16 %v326
    %v405 = vunpack.c.h.b16 %v326
    %v406 = vunpack.c.l.b16 %v327
    %v407 = vunpack.c.h.b16 %v327
    %v408 = vunpack.c.l.b16 %v328
    %v409 = vunpack.c.h.b16 %v328
    %v410 = vunpack.c.l.b16 %v329
    %v411 = vunpack.c.h.b16 %v329
    %v412 = vunpack.c.l.b16 %v330
    %v413 = vunpack.c.h.b16 %v330
    %v414 = vunpack.c.l.b16 %v331
    %v415 = vunpack.c.h.b16 %v331
    %v416 = vunpack.c.l.b16 %v332
    %v417 = vunpack.c.h.b16 %v332
    %v418 = vunpack.c.l.b16 %v333
    %v419 = vunpack.c.h.b16 %v333
    %v420 = vunpack.c.l.b16 %v334
    %v421 = vunpack.c.h.b16 %v334
    %v422 = vunpack.c.l.b16 %v335
    %v423 = vunpack.c.h.b16 %v335
    %v424 = vunpack.c.l.b16 %v336
    %v425 = vunpack.c.h.b16 %v336
    %v426 = vunpack.c.l.b16 %v337
    %v427 = vunpack.c.h.b16 %v337
    %v428 = vunpack.c.l.b16 %v338
    %v429 = vunpack.c.h.b16 %v338
    %v430 = vunpack.c.l.b16 %v339
    %v431 = vunpack.c.h.b16 %v339
    %v432 = vunpack.c.l.b16 %v340
    %v433 = vunpack.c.h.b16 %v340
    %v434 = vunpack.c.l.b16 %v341
    %v435 = vunpack.c.h.b16 %v341
    %v436 = vunpack.c.l.b16 %v342
    %v437 = vunpack.c.h.b16 %v342
    %v438 = vunpack.c.l.b16 %v343
    %v439 = vunpack.c.h.b16 %v343
    %v440 = vunpack.c.l.b16 %v344
    %v441 = vunpack.c.h.b16 %v344
    %v442 = vunpack.c.l.b16 %v345
    %v443 = vunpack.c.h.b16 %v345
    %v444 = vunpack.c.l.b16 %v346
    %v445 = vunpack.c.h.b16 %v346
    %v446 = vunpack.c.l.b16 %v347
    %v447 = vunpack.c.h.b16 %v347
    %v448 = vunpack.c.l.b16 %v348
    %v449 = vunpack.c.h.b16 %v348
    %v450 = vunpack.c.l.b16 %v349
    %v451 = vunpack.c.h.b16 %v349
    %v452 = vunpack.c.l.b16 %v350
    %v453 = vunpack.c.h.b16 %v350
    %v454 = vunpack.c.l.b16 %v351
    %v455 = vunpack.c.h.b16 %v351
    %v456 = vunpack.c.l.b16 %v352
    %v457 = vunpack.c.h.b16 %v352
    %v458 = vunpack.c.l.b16 %v353
    %v459 = vunpack.c.h.b16 %v353
    %v460 = vunpack.c.l.b16 %v354
    %v461 = vunpack.c.h.b16 %v354
    %v462 = vunpack.c.l.b16 %v355
    %v463 = vunpack.c.h.b16 %v355
    %v464 = vpack.c.b16 %v402, %v400
    %v465 = vpack.c.b16 %v403, %v401
    %v466 = vpack.c.b16 %v406, %v404
    %v467 = vpack.c.b16 %v407, %v405
    %v468 = vpack.c.b16 %v410, %v408
    %v469 = vpack.c.b16 %v411, %v409
    %v470 = vpack.c.b16 %v414, %v412
    %v471 = vpack.c.b16 %v415, %v413
    %v472 = vpack.c.b16 %v418, %v416
    %v473 = vpack.c.b16 %v419, %v417
    %v474 = vpack.c.b16 %v422, %v420
    %v475 = vpack.c.b16 %v423, %v421
    %v476 = vpack.c.b16 %v426, %v424
    %v477 = vpack.c.b16 %v427, %v425
    %v478 = vpack.c.b16 %v430, %v428
    %v479 = vpack.c.b16 %v431, %v429
    %v480 = vpack.c.b16 %v434, %v432
    %v481 = vpack.c.b16 %v435, %v433
    %v482 = vpack.c.b16 %v438, %v436
    %v483 = vpack.c.b16 %v439, %v437
    %v484 = vpack.c.b16 %v442, %v440
    %v485 = vpack.c.b16 %v443, %v441
    %v486 = vpack.c.b16 %v446, %v444
    %v487 = vpack.c.b16 %v447, %v445
    %v488 = vpack.c.b16 %v450, %v448
    %v489 = vpack.c.b16 %v451, %v449
    %v490 = vpack.c.b16 %v454, %v452
    %v491 = vpack.c.b16 %v455, %v453
    %v492 = vpack.c.b16 %v458, %v456
    %v493 = vpack.c.b16 %v459, %v457
    %v494 = vpack.c.b16 %v462, %v460
    %v495 = vpack.c.b16 %v463, %v461
    %528 = vmatprep.subr.bf16.mxu0 %v465
    %529 = vmatpush1.bf16.msra.mxu0 %v464
    %530 = vmatprep.subr.bf16.mxu0 %v467
    %531 = vmatpush1.bf16.msra.mxu0 %v466
    %532 = vmatprep.subr.bf16.mxu0 %v469
    %533 = vmatpush1.bf16.msra.mxu0 %v468
    %534 = vmatprep.subr.bf16.mxu0 %v471
    %535 = vmatpush1.bf16.msra.mxu0 %v470
    %536 = vmatprep.subr.bf16.mxu0 %v473
    %537 = vmatpush1.bf16.msra.mxu0 %v472
    %538 = vmatprep.subr.bf16.mxu0 %v475
    %539 = vmatpush1.bf16.msra.mxu0 %v474
    %540 = vmatprep.subr.bf16.mxu0 %v477
    %541 = vmatpush1.bf16.msra.mxu0 %v476
    %542 = vmatprep.subr.bf16.mxu0 %v479
    %543 = vmatpush1.bf16.msra.mxu0 %v478
    %544 = vmatprep.subr.bf16.mxu0 %v481
    %545 = vmatpush1.bf16.msra.mxu0 %v480
    %546 = vmatprep.subr.bf16.mxu0 %v483
    %547 = vmatpush1.bf16.msra.mxu0 %v482
    %548 = vmatprep.subr.bf16.mxu0 %v485
    %549 = vmatpush1.bf16.msra.mxu0 %v484
    %550 = vmatprep.subr.bf16.mxu0 %v487
    %551 = vmatpush1.bf16.msra.mxu0 %v486
    %552 = vmatprep.subr.bf16.mxu0 %v489
    %553 = vmatpush1.bf16.msra.mxu0 %v488
    %554 = vmatprep.subr.bf16.mxu0 %v491
    %555 = vmatpush1.bf16.msra.mxu0 %v490
    %556 = vmatprep.subr.bf16.mxu0 %v493
    %557 = vmatpush1.bf16.msra.mxu0 %v492
    %558 = vmatprep.subr.bf16.mxu0 %v495
    %559 = vmatpush1.bf16.msra.mxu0 %v494
    %560 = vmatprep.mubr.bf16.mxu0 %v309
    %561 = vmatmul.mubr.bf16.gmra.mrb[0].mxu0 %v308
    %v562 = vpop.f32.mrb[0].mxu0
    %v563 = vadd.f32 %v361, %v562
    %v564 = vpop.f32.mrb[0].mxu0
    %v565 = vadd.f32 %v365, %v564
    %v566 = vpop.f32.mrb[0].mxu0
    %v567 = vadd.f32 %v361, %v566
    %v568 = vpop.f32.mrb[0].mxu0
    %v569 = vadd.f32 %v365, %v568
    %570 = vmatprep.mubr.bf16.mxu0 %v311
    %571 = vmatmul.mubr.bf16.gmra.mrb[0].mxu0 %v310
    %v572 = vpop.f32.mrb[0].mxu0
    %v573 = vadd.f32 %v361, %v572
    %v574 = vpop.f32.mrb[0].mxu0
    %v575 = vadd.f32 %v365, %v574
    %v576 = vpop.f32.mrb[0].mxu0
    %v577 = vadd.f32 %v361, %v576
    %v578 = vpop.f32.mrb[0].mxu0
    %v579 = vadd.f32 %v365, %v578
    %580 = vmatprep.mubr.bf16.mxu0 %v313
    %581 = vmatmul.mubr.bf16.gmra.mrb[0].mxu0 %v312
    %v582 = vpop.f32.mrb[0].mxu0
    %v583 = vadd.f32 %v361, %v582
    %v584 = vpop.f32.mrb[0].mxu0
    %v585 = vadd.f32 %v365, %v584
    %v586 = vpop.f32.mrb[0].mxu0
    %v587 = vadd.f32 %v361, %v586
    %v588 = vpop.f32.mrb[0].mxu0
    %v589 = vadd.f32 %v365, %v588
    %590 = vmatprep.mubr.bf16.mxu0 %v315
    %591 = vmatmul.mubr.bf16.gmra.mrb[0].mxu0 %v314
    %v592 = vpop.f32.mrb[0].mxu0
    %v593 = vadd.f32 %v361, %v592
    %v594 = vpop.f32.mrb[0].mxu0
    %v595 = vadd.f32 %v365, %v594
    %v596 = vpop.f32.mrb[0].mxu0
    %v597 = vadd.f32 %v361, %v596
    %v598 = vpop.f32.mrb[0].mxu0
    %v599 = vadd.f32 %v365, %v598
    %600 = vmatprep.mubr.bf16.mxu0 %v317
    %601 = vmatmul.mubr.bf16.gmra.mrb[0].mxu0 %v316
    %v602 = vpop.f32.mrb[0].mxu0
    %v603 = vadd.f32 %v361, %v602
    %v604 = vpop.f32.mrb[0].mxu0
    %v605 = vadd.f32 %v365, %v604
    %v606 = vpop.f32.mrb[0].mxu0
    %v607 = vadd.f32 %v361, %v606
    %v608 = vpop.f32.mrb[0].mxu0
    %v609 = vadd.f32 %v365, %v608
    %610 = vmatprep.mubr.bf16.mxu0 %v319
    %611 = vmatmul.mubr.bf16.gmra.mrb[0].mxu0 %v318
    %v612 = vpop.f32.mrb[0].mxu0
    %v613 = vadd.f32 %v361, %v612
    %v614 = vpop.f32.mrb[0].mxu0
    %v615 = vadd.f32 %v365, %v614
    %v616 = vpop.f32.mrb[0].mxu0
    %v617 = vadd.f32 %v361, %v616
    %v618 = vpop.f32.mrb[0].mxu0
    %v619 = vadd.f32 %v365, %v618
    %620 = vmatprep.mubr.bf16.mxu0 %v321
    %621 = vmatmul.mubr.bf16.gmra.mrb[0].mxu0 %v320
    %v622 = vpop.f32.mrb[0].mxu0
    %v623 = vadd.f32 %v361, %v622
    %v624 = vpop.f32.mrb[0].mxu0
    %v625 = vadd.f32 %v365, %v624
    %v626 = vpop.f32.mrb[0].mxu0
    %v627 = vadd.f32 %v361, %v626
    %v628 = vpop.f32.mrb[0].mxu0
    %v629 = vadd.f32 %v365, %v628
    %630 = vmatprep.mubr.bf16.mxu0 %v323
    %631 = vmatmul.mubr.bf16.gmra.mrb[0].mxu0 %v322
    %v632 = vpop.f32.mrb[0].mxu0
    %v633 = vadd.f32 %v361, %v632
    %v634 = vpop.f32.mrb[0].mxu0
    %v635 = vadd.f32 %v365, %v634
    %v636 = vpop.f32.mrb[0].mxu0
    %v637 = vadd.f32 %v361, %v636
    %v638 = vpop.f32.mrb[0].mxu0
    %v639 = vadd.f32 %v365, %v638
    %640 = vdwg.mxu0
    %v641 = vmax.f32 %v563, 0.0
    %v642 = vmax.f32 %v565, 0.0
    %v643 = vmax.f32 %v567, 0.0
    %v644 = vmax.f32 %v569, 0.0
    %v645 = vmax.f32 %v573, 0.0
    %v646 = vmax.f32 %v575, 0.0
    %v647 = vmax.f32 %v577, 0.0
    %v648 = vmax.f32 %v579, 0.0
    %v649 = vmax.f32 %v583, 0.0
    %v650 = vmax.f32 %v585, 0.0
    %v651 = vmax.f32 %v587, 0.0
    %v652 = vmax.f32 %v589, 0.0
    %v653 = vmax.f32 %v593, 0.0
    %v654 = vmax.f32 %v595, 0.0
    %v655 = vmax.f32 %v597, 0.0
    %v656 = vmax.f32 %v599, 0.0
    %v657 = vmax.f32 %v603, 0.0
    %v658 = vmax.f32 %v605, 0.0
    %v659 = vmax.f32 %v607, 0.0
    %v660 = vmax.f32 %v609, 0.0
    %v661 = vmax.f32 %v613, 0.0
    %v662 = vmax.f32 %v615, 0.0
    %v663 = vmax.f32 %v617, 0.0
    %v664 = vmax.f32 %v619, 0.0
    %v665 = vmax.f32 %v623, 0.0
    %v666 = vmax.f32 %v625, 0.0
    %v667 = vmax.f32 %v627, 0.0
    %v668 = vmax.f32 %v629, 0.0
    %v669 = vmax.f32 %v633, 0.0
    %v670 = vmax.f32 %v635, 0.0
    %v671 = vmax.f32 %v637, 0.0
    %v672 = vmax.f32 %v639, 0.0
    %v673 = vld [vmem:[%s5] sm:$0x3]
    %s674 = sld [smem:[#allocation2]]
    %v675 = vstv %s674
    %v677 = vlaneseq
    %v678 = vshrl.u32 %v677, 7
    %v679 = vsub.s32 0, %v678
    %v680 = vrot.slane %v673, %v679
    %v681 = vlaneseq
    %v682 = vshrl.u32 %v681, 7
    %v683 = vsub.s32 1, %v682
    %v684 = vrot.slane %v673, %v683
    %687 = vmatprep.subr.mxu0 %v642
    %688 = vmatpush1.xpose.msra.mxu0 %v641
    %689 = vmatprep.subr.mxu0 %v644
    %690 = vmatpush1.xpose.msra.mxu0 %v643
    %691 = vmatprep.subr.mxu0 %v646
    %692 = vmatpush1.xpose.msra.mxu0 %v645
    %693 = vmatprep.subr.mxu0 %v648
    %694 = vmatpush1.xpose.msra.mxu0 %v647
    %695 = vmatprep.subr.mxu0 %v650
    %696 = vmatpush1.xpose.msra.mxu0 %v649
    %697 = vmatprep.subr.mxu0 %v652
    %698 = vmatpush1.xpose.msra.mxu0 %v651
    %699 = vmatprep.subr.mxu0 %v654
    %700 = vmatpush1.xpose.msra.mxu0 %v653
    %701 = vmatprep.subr.mxu0 %v656
    %702 = vmatpush1.xpose.msra.mxu0 %v655
    %703 = vmatprep.subr.mxu0 %v658
    %704 = vmatpush1.xpose.msra.mxu0 %v657
    %705 = vmatprep.subr.mxu0 %v660
    %706 = vmatpush1.xpose.msra.mxu0 %v659
    %707 = vmatprep.subr.mxu0 %v662
    %708 = vmatpush1.xpose.msra.mxu0 %v661
    %709 = vmatprep.subr.mxu0 %v664
    %710 = vmatpush1.xpose.msra.mxu0 %v663
    %711 = vmatprep.subr.mxu0 %v666
    %712 = vmatpush1.xpose.msra.mxu0 %v665
    %713 = vmatprep.subr.mxu0 %v668
    %714 = vmatpush1.xpose.msra.mxu0 %v667
    %715 = vmatprep.subr.mxu0 %v670
    %716 = vmatpush1.xpose.msra.mxu0 %v669
    %717 = vmatprep.subr.mxu0 %v672
    %718 = vmatpush1.xpose.msra.mxu0 %v671
    %719 = vmatprep.subr.mxu0 0.0
    %720 = vmatpush1.xpose.msra.mxu0 0.0
    %721 = vmatprep.subr.mxu0 0.0
    %722 = vmatpush1.xpose.msra.mxu0 0.0
    %723 = vmatprep.subr.mxu0 0.0
    %724 = vmatpush1.xpose.msra.mxu0 0.0
    %725 = vmatprep.subr.mxu0 0.0
    %726 = vmatpush1.xpose.msra.mxu0 0.0
    %727 = vmatprep.subr.mxu0 0.0
    %728 = vmatpush1.xpose.msra.mxu0 0.0
    %729 = vmatprep.subr.mxu0 0.0
    %730 = vmatpush1.xpose.msra.mxu0 0.0
    %731 = vmatprep.subr.mxu0 0.0
    %732 = vmatpush1.xpose.msra.mxu0 0.0
    %733 = vmatprep.subr.mxu0 0.0
    %734 = vmatpush1.xpose.msra.mxu0 0.0
    %735 = vmatprep.subr.mxu0 0.0
    %736 = vmatpush1.xpose.msra.mxu0 0.0
    %737 = vmatprep.subr.mxu0 0.0
    %738 = vmatpush1.xpose.msra.mxu0 0.0
    %739 = vmatprep.subr.mxu0 0.0
    %740 = vmatpush1.xpose.msra.mxu0 0.0
    %741 = vmatprep.subr.mxu0 0.0
    %742 = vmatpush1.xpose.msra.mxu0 0.0
    %743 = vmatprep.subr.mxu0 0.0
    %744 = vmatpush1.xpose.msra.mxu0 0.0
    %745 = vmatprep.subr.mxu0 0.0
    %746 = vmatpush1.xpose.msra.mxu0 0.0
    %747 = vmatprep.subr.mxu0 0.0
    %748 = vmatpush1.xpose.msra.mxu0 0.0
    %749 = vmatprep.subr.mxu0 0.0
    %750 = vmatpush1.xpose.msra.mxu0 0.0
    %751 = vmatprep.mubr.f32.mxu0 %v684
    %752 = vmatmul.mubr.f32.gmra.mrb[0].mxu0 %v680
    %v753 = vpop.f32.mrb[0].mxu0
    %v754 = vadd.f32 %v675, %v753
    %v755 = vpop.f32.mrb[0].mxu0
    %756 = vdwg.mxu0
    %757 = vst [vmem:[%s7] sm:$0x1] %v754
    // Predicated region
    $region34: #{soft_q_forward.1} parent=1 // pred_check
      _
    $region35: #{soft_q_forward.1} parent=1 // pred_check_branch
      %759 = sbr.rel (0) target = $region37
    $region36: #{soft_q_forward.1} parent=1 // pred_region
      _
    $region37: #{soft_q_forward.1} parent=1 // pred_fallthru
      _
    // Predicated region
    $region38: #{soft_q_forward.1} parent=1 // pred_check
      _
    $region39: #{soft_q_forward.1} parent=1 // pred_check_branch
      %761 = sbr.rel (0) target = $region41
    $region40: #{soft_q_forward.1} parent=1 // pred_region
      _
    $region41: #{soft_q_forward.1} parent=1 // pred_fallthru
      _
    %762 = vsyncpa [#allocation4], 1

</llo_original>
